<compile_context>
chip_gen: v7x
topology: tpu7x:2x2x1
jax: 0.10.0
libtpu: 0.0.40
codegen_flags: <defaults>
</compile_context>

<pallas_src>
import functools

import jax
import jax.numpy as jnp
from jax.experimental import pallas as pl
from jax.experimental.pallas import tpu as pltpu

_SMALL_FASTPATH_ELEMS = 4096          # below this, return the stored array
_SPLIT_MIN_BYTES = 2 * 1024 * 1024    # only split copies >= 2 MiB
_MAX_DMAS = 4                         # max DMAs in flight
_CHUNK_ALIGN = 32                     # sublane-tile-safe split (f32/bf16/int8)


def _chunk_bounds(shape, itemsize):
    """Static (start, rows) chunks along dim 0, or None for one whole-array DMA."""
    if len(shape) < 2:
        return None
    total_bytes = itemsize
    for d in shape:
        total_bytes *= d
    dim0 = shape[0]
    if total_bytes < _SPLIT_MIN_BYTES or dim0 < 2 * _CHUNK_ALIGN:
        return None
    n = max(2, min(_MAX_DMAS, dim0 // _CHUNK_ALIGN))
    chunk = -(-dim0 // n)                                   # ceil
    chunk = -(-chunk // _CHUNK_ALIGN) * _CHUNK_ALIGN        # round up to align
    bounds = []
    start = 0
    while start < dim0:
        size = min(chunk, dim0 - start)
        bounds.append((start, size))
        start += size
    return tuple(bounds)


@functools.lru_cache(maxsize=None)
def _build_dma_identity(shape, dtype_str):
    """Build (once per shape/dtype) a jitted DMA-only HBM->HBM identity copy."""
    dtype = jnp.dtype(dtype_str)
    bounds = _chunk_bounds(shape, dtype.itemsize)
    n_dmas = 1 if bounds is None else len(bounds)

    def kernel(src_ref, dst_ref, sems):
        copies = []
        if bounds is None:
            cp = pltpu.make_async_copy(src_ref, dst_ref, sems.at[0])
            cp.start()
            copies.append(cp)
        else:
            # Issue every chunk DMA before waiting -> multiple streams in flight.
            for t, (r0, rows) in enumerate(bounds):
                cp = pltpu.make_async_copy(
                    src_ref.at[pl.ds(r0, rows)],
                    dst_ref.at[pl.ds(r0, rows)],
                    sems.at[t],
                )
                cp.start()
                copies.append(cp)
        for cp in copies:
            cp.wait()

    call = pl.pallas_call(
        kernel,
        out_shape=jax.ShapeDtypeStruct(shape, dtype),
        in_specs=[pl.BlockSpec(memory_space=pl.ANY)],
        out_specs=pl.BlockSpec(memory_space=pl.ANY),
        scratch_shapes=[pltpu.SemaphoreType.DMA((n_dmas,))],
    )
    return jax.jit(call)


def _pallas_identity(x, force_kernel=False):
    """Forward pass: identity.  DMA-copy on device for non-trivial tensors."""
    x = jnp.asarray(x)
    if x.size == 0 or x.ndim == 0:
        return x
    if not force_kernel and x.size < _SMALL_FASTPATH_ELEMS:
        # Tiny parameter tables: returning the stored array matches the torch
        # module exactly (forward returns self.param itself, not a copy).
        return x
    call = _build_dma_identity(tuple(x.shape), str(x.dtype))
    return call(x)


class Parameter:
    """JAX/Pallas port of the PyTorch `Parameter` wrapper module."""

    def __init__(self, val, frozen: bool = False):
        val = jnp.asarray(val)
        # torch.Tensor(val) promotes Python / integer data to float32; if the
        # caller already hands a floating array (f32/bf16/...), keep its dtype
        # (the forward is bandwidth-bound, upcasting would double traffic).
        if not jnp.issubdtype(val.dtype, jnp.floating):
            val = val.astype(jnp.float32)
        self.val = val
        self.param = val  # nn.Parameter(val): same values, trainable leaf
        self.frozen = frozen

    def forward(self):
        # TODO(synk): torch's `.to(self.param.device)` has no Pallas analogue;
        # in JAX both arrays already live on device.
        if self.frozen:
            return _pallas_identity(self.val)
        return _pallas_identity(self.param)

    __call__ = forward

    def freeze(self):
        # param.detach().clone() -> value snapshot, gradient-stopped.
        self.val = jax.lax.stop_gradient(self.param)
        self.frozen = True

    def unfreeze(self):
        self.frozen = False

    def __repr__(self):
        return 'val: {}, param: {}'.format(self.val, self.param)


if __name__ == "__main__":
    key = jax.random.PRNGKey(0)
    k0, k1, k2, k3 = jax.random.split(key, 4)

    # --- Small parameter table (module's typical use): fast path ------------
    init_val = jax.random.normal(k0, (8, 32), dtype=jnp.float32)
    p = Parameter(init_val, frozen=False)
    out = jax.block_until_ready(p())
    assert out.shape == (8, 32) and out.dtype == jnp.float32
    assert bool(jnp.allclose(out, init_val))

    # Force the DMA kernel on the same small table (explicit device forward).
    out_k = jax.block_until_ready(_pallas_identity(init_val, force_kernel=True))
    assert bool(jnp.array_equal(out_k, init_val))

    # freeze / unfreeze semantics
    p.freeze()
    out_frozen = jax.block_until_ready(p())
    assert bool(jnp.allclose(out_frozen, init_val))
    p.unfreeze()
    out_again = jax.block_until_ready(p())
    assert bool(jnp.allclose(out_again, init_val))

    # --- Mid-size f32: single whole-array DMA (above fast-path threshold) ---
    mid = jax.random.normal(k1, (256, 128), dtype=jnp.float32)
    p_mid = Parameter(mid)
    out_mid = jax.block_until_ready(p_mid())
    assert bool(jnp.array_equal(out_mid, mid))

    # --- Odd shape (not multiples of 8/128), bf16 dtype preserved -----------
    odd = jax.random.normal(k2, (100, 130), dtype=jnp.bfloat16)
    p_odd = Parameter(odd)
    out_odd = jax.block_until_ready(p_odd())
    assert out_odd.dtype == jnp.bfloat16
    assert bool(jnp.array_equal(out_odd, odd))

    # --- Larger tensor: split into multiple DMAs in flight ------------------
    big = jax.random.normal(k3, (4096, 256), dtype=jnp.float32)  # 4 MiB -> 4 chunks
    p_big = Parameter(big)
    out_big = jax.block_until_ready(p_big())
    assert bool(jnp.array_equal(out_big, big))

    # Repeated forward hits the cached jitted pallas_call (no retrace).
    out_big2 = jax.block_until_ready(p_big())
    assert bool(jnp.array_equal(out_big2, big))

    print("KERNEL_OK")
</pallas_src>

<mosaic_0001>
module attributes {stable_mosaic.version = 11 : i64} {
  func.func @kernel(%arg0: memref<8x32xf32, #tpu.memory_space<any>>, %arg1: memref<8x32xf32, #tpu.memory_space<any>>, %arg2: memref<1x!tpu.dma_semaphore, #tpu.memory_space<semaphore_mem>>) attributes {dimension_semantics = [], scalar_prefetch = 0 : i64, scratch_operands = 1 : i64, tpu.core_type = #tpu.core_type<tc>} {
    %c0_i32 = arith.constant 0 : i32
    %0 = tpu.memref_slice %arg2[%c0_i32] : memref<1x!tpu.dma_semaphore, #tpu.memory_space<semaphore_mem>> -> memref<1x!tpu.dma_semaphore, #tpu.memory_space<semaphore_mem>>
    %1 = tpu.memref_squeeze %0 : memref<1x!tpu.dma_semaphore, #tpu.memory_space<semaphore_mem>> -> memref<!tpu.dma_semaphore, #tpu.memory_space<semaphore_mem>>
    tpu.enqueue_dma source(%arg0 : memref<8x32xf32, #tpu.memory_space<any>>) target(%arg1 : memref<8x32xf32, #tpu.memory_space<any>>) target_semaphore(%1 : memref<!tpu.dma_semaphore, #tpu.memory_space<semaphore_mem>>)
    %c0_i32_0 = arith.constant 0 : i32
    %2 = tpu.memref_slice %arg2[%c0_i32_0] : memref<1x!tpu.dma_semaphore, #tpu.memory_space<semaphore_mem>> -> memref<1x!tpu.dma_semaphore, #tpu.memory_space<semaphore_mem>>
    %3 = tpu.memref_squeeze %2 : memref<1x!tpu.dma_semaphore, #tpu.memory_space<semaphore_mem>> -> memref<!tpu.dma_semaphore, #tpu.memory_space<semaphore_mem>>
    tpu.wait_dma2 semaphore(%3 : memref<!tpu.dma_semaphore, #tpu.memory_space<semaphore_mem>>) src(%arg0 : memref<8x32xf32, #tpu.memory_space<any>>) dst(%arg1 : memref<8x32xf32, #tpu.memory_space<any>>)
    return
  }
}

</mosaic_0001>

<llo_original>
// kernel: tpu_custom_call.1
$region0: #{tpu_custom_call.1}
  #allocation0 [shape = 'u32[]', space=smem, size = 0x4, offset = 0x4, fixed_abs, tag = 'smem constant byte address 0x4 - core index']
  #allocation1 [shape = 'u32[144,128]{1,0:T(1,128)}', space=vmem, size = 0x12000, scoped, tag = 'internal scratch']
  #allocation2 [shape = 's32[1]{0}', space=sflag, size = 0x4, scoped, tag = 'scratch operand']
  #allocation3 [shape = 's32[]', space=sflag, size = 0x4, offset = 0, fixed_abs, tag = 'sflag constant byte address 0x0 - dummy sync flag']
  #allocation4 [shape = 'u32[0]{0}', space=smem, size = 0, offset = 0, fixed_abs, tag = 'smem constant byte address 0x0 - null']
  %s0 = inlined_call_operand.hbm [shape: f32[8,32], index: 0, kind: input, shape index: {}]
  %s1 = inlined_call_operand.hbm [shape: f32[8,32], index: 1, kind: output, shape index: {}]
  %s2 = sld [smem:[#allocation0]]
  $region2: #{tpu_custom_call.1} parent=0
    _
  %s4 = ssub.s32 1, %s2
  %s5 = scalar_select 0, %s4, %s2
  %s7 = sshll.u32 1, 14
  %s8 = sxor.u32 4294967295, %s7
  %s11 = sshll.u32 3, 24
  %s12 = sxor.u32 4294967295, %s11
  %s13 = sand.u32 0, %s12
  %s15 = sor.u32 %s13, 0
  %18 = dma.general %s0, 128, %s1, [#allocation2], [#allocation3], [#allocation4], %s15, 0
  %s19 = smul.u32 8, 1
  %s20 = sshll.u32 %s19, 4
  %21 = dma.done [#allocation2], %s20
  %22 = vsyncmov [#allocation2]
  %s23 = vpop.sfrf %22
  %p24 = scmp.eq.s32.totalorder %s23, 0
  %p25 = pneg %p24
  %27 = shalt.err (%p25)

</llo_original>
